<compile_context>
chip_gen: v7x
topology: tpu7x:2x2x1
jax: 0.10.0
libtpu: 0.0.40
codegen_flags: <defaults>
</compile_context>

<pallas_src>
import jax
import jax.numpy as jnp
from jax.experimental import pallas as pl
from jax.experimental.pallas import tpu as pltpu


# ----------------------------------------------------------------------------
# Kernel builder
# ----------------------------------------------------------------------------
def _make_kernel(bias: bool, use_scratch: bool):
    """Matmul(+bias) kernel over a (i, j, k) grid with k as the reduction."""

    def kernel(*refs):
        if bias:
            a_ref, b_ref, c_ref, o_ref = refs[:4]
            acc_ref = refs[4] if use_scratch else o_ref
        else:
            a_ref, b_ref, o_ref = refs[:3]
            acc_ref = refs[3] if use_scratch else o_ref

        k = pl.program_id(2)

        @pl.when(k == 0)
        def _init():
            if bias:
                # Fold bias into accumulator init. C's block index is constant
                # across k so it is DMA'd only once per (i, j) output tile.
                acc_ref[...] = c_ref[...].astype(acc_ref.dtype)
            else:
                acc_ref[...] = jnp.zeros_like(acc_ref)

        acc_ref[...] += jnp.dot(a_ref[...], b_ref[...],
                                preferred_element_type=jnp.float32)

        if use_scratch:
            @pl.when(k == pl.num_programs(2) - 1)
            def _finalize():
                o_ref[...] = acc_ref[...].astype(o_ref.dtype)

    return kernel


# ----------------------------------------------------------------------------
# Tiling helpers
# ----------------------------------------------------------------------------
def _round_up(n: int, m: int) -> int:
    return ((n + m - 1) // m) * m


def _select_tiles(xp, yp, dp, in_isz, out_isz, bias, use_scratch,
                  budget_bytes=20 << 20):
    """Pick (tm, tn, tk) tiles: big, lane-dense, under a VMEM working-set budget.

    All padded dims are multiples of 128, so 128 always divides and is the
    fallback. Prefers a parallel (i, j) grid product >= 2 (v7x dual-TC), then
    the largest output tile, then lane-dense tn, then large tk.
    """
    def divisors(n, opts):
        return tuple(t for t in opts if n % t == 0) or (128,)

    tms = divisors(xp, (512, 256, 128))
    tns = divisors(yp, (512, 256, 128))
    tks = divisors(dp, (2048, 1024, 512, 256, 128))

    def working_set(tm, tn, tk):
        ws = 2 * tm * tk * in_isz          # A tile, double-buffered
        ws += 2 * tk * tn * in_isz         # B tile, double-buffered
        ws += 2 * tm * tn * out_isz        # O tile, double-buffered
        if bias:
            ws += 2 * tm * tn * out_isz    # C tile, double-buffered
        if use_scratch:
            ws += tm * tn * 4              # f32 accumulator scratch
        return ws

    best = None
    for tm in tms:
        for tn in tns:
            for tk in tks:
                ws = working_set(tm, tn, tk)
                if ws > budget_bytes:
                    continue
                par = (xp // tm) * (yp // tn)
                key = (min(par, 2), tm * tn, tn, tk)
                if best is None or key > best[0]:
                    best = (key, (tm, tn, tk), ws)

    if best is None:  # pathological budget; fall back to smallest legal tiles
        tm, tn, tk = min(tms), min(tns), min(tks)
        return tm, tn, tk, working_set(tm, tn, tk)
    (_, (tm, tn, tk), ws) = best
    return tm, tn, tk, ws


# ----------------------------------------------------------------------------
# Wrapper
# ----------------------------------------------------------------------------
def matrix_factorize_forward(A: jnp.ndarray,
                             B: jnp.ndarray,
                             C: jnp.ndarray = None,
                             bias: bool = True,
                             compute_dtype=None,
                             allow_xla_fallback: bool = True) -> jnp.ndarray:
    """out = A @ B (+ C), matching MatrixFactorize.forward().

    compute_dtype: optional narrower MXU operand dtype for A/B (e.g.
    jnp.bfloat16). Accumulation stays f32; the output keeps the input
    precision. Default (None) preserves exact f32 reference numerics.
    """
    x, d = A.shape
    d2, y = B.shape
    assert d == d2, f"inner dims mismatch: A is {A.shape}, B is {B.shape}"
    if bias:
        assert C is not None and C.shape == (x, y), "bias matrix C must be (x, y)"

    operands = (A, B, C) if bias else (A, B)
    out_dtype = jnp.result_type(*[o.dtype for o in operands])
    mm_dtype = jnp.dtype(compute_dtype) if compute_dtype is not None else jnp.dtype(out_dtype)

    A = A.astype(mm_dtype)
    B = B.astype(mm_dtype)
    if bias:
        C = C.astype(out_dtype)

    # Tiny problems: per-call / per-grid-step overhead dominates; XLA's fused
    # matmul+add is already optimal there.
    if allow_xla_fallback and x <= 128 and y <= 128 and d <= 256:
        out = jnp.dot(A, B, preferred_element_type=jnp.float32)
        if bias:
            out = out + C.astype(jnp.float32)
        return out.astype(out_dtype)

    # Pad every dim up to a multiple of 128 so tiles are (8,128)-aligned and
    # output stores are unmasked; slice the result back at the end.
    xp, yp, dp = _round_up(x, 128), _round_up(y, 128), _round_up(d, 128)
    if (xp, dp) != (x, d):
        A = jnp.pad(A, ((0, xp - x), (0, dp - d)))
    if (dp, yp) != (d, y):
        B = jnp.pad(B, ((0, dp - d), (0, yp - y)))
    if bias and (xp, yp) != (x, y):
        C = jnp.pad(C, ((0, xp - x), (0, yp - y)))

    use_scratch = jnp.dtype(out_dtype) != jnp.dtype(jnp.float32)
    in_isz = jnp.dtype(mm_dtype).itemsize
    out_isz = jnp.dtype(out_dtype).itemsize

    tm, tn, tk, ws = _select_tiles(xp, yp, dp, in_isz, out_isz, bias, use_scratch)
    grid = (xp // tm, yp // tn, dp // tk)

    a_spec = pl.BlockSpec((tm, tk), lambda i, j, k: (i, k))
    b_spec = pl.BlockSpec((tk, tn), lambda i, j, k: (k, j))
    c_spec = pl.BlockSpec((tm, tn), lambda i, j, k: (i, j))
    o_spec = pl.BlockSpec((tm, tn), lambda i, j, k: (i, j))

    kernel = _make_kernel(bias=bias, use_scratch=use_scratch)
    in_specs = [a_spec, b_spec, c_spec] if bias else [a_spec, b_spec]
    args = (A, B, C) if bias else (A, B)
    scratch = [pltpu.VMEM((tm, tn), jnp.float32)] if use_scratch else []

    flops = 2 * x * y * d + (x * y if bias else 0)
    bytes_accessed = (x * d + d * y) * in_isz + x * y * out_isz
    if bias:
        bytes_accessed += x * y * out_isz
    cost = pl.CostEstimate(flops=flops, transcendentals=0,
                           bytes_accessed=bytes_accessed)

    # Leave headroom over the working set; 48 MiB stays inside v7x's 64 MiB
    # physical VMEM and lifts v5e's 16 MiB default scoped limit.
    vmem_limit = int(min(max(32 << 20, 2 * ws), 48 << 20))

    out_padded = pl.pallas_call(
        kernel,
        out_shape=jax.ShapeDtypeStruct((xp, yp), out_dtype),
        grid=grid,
        in_specs=in_specs,
        out_specs=o_spec,
        scratch_shapes=scratch,
        compiler_params=pltpu.CompilerParams(
            dimension_semantics=("parallel", "parallel", "arbitrary"),
            vmem_limit_bytes=vmem_limit),
        cost_estimate=cost,
    )(*args)

    if (xp, yp) != (x, y):
        out_padded = out_padded[:x, :y]
    return out_padded


# ----------------------------------------------------------------------------
# Example / self-test
# ----------------------------------------------------------------------------
def _xavier_uniform(key, shape, dtype=jnp.float32):
    """torch.nn.init.xavier_uniform_ equivalent for a 2-D tensor."""
    fan_out, fan_in = shape
    bound = (6.0 / (fan_in + fan_out)) ** 0.5
    return jax.random.uniform(key, shape, dtype=dtype, minval=-bound, maxval=bound)


if __name__ == "__main__":
    key = jax.random.PRNGKey(0)
    kA, kB, kC, kA2, kB2, kC2 = jax.random.split(key, 6)

    # --- aligned case (hits the 256-tile Pallas path): M is (256, 512), dim=128
    x_dim, y_dim, latent = 256, 512, 128
    A = _xavier_uniform(kA, (x_dim, latent))
    B = _xavier_uniform(kB, (latent, y_dim))
    C = _xavier_uniform(kC, (x_dim, y_dim))

    out = jax.block_until_ready(matrix_factorize_forward(A, B, C, bias=True))
    ref = jnp.dot(A, B, preferred_element_type=jnp.float32) + C
    assert out.shape == (x_dim, y_dim) and out.dtype == jnp.float32
    assert jnp.allclose(out, ref, atol=1e-5, rtol=1e-5)

    # bias=False path: out = A @ B
    out_nb = jax.block_until_ready(matrix_factorize_forward(A, B, bias=False))
    ref_nb = jnp.dot(A, B, preferred_element_type=jnp.float32)
    assert jnp.allclose(out_nb, ref_nb, atol=1e-5, rtol=1e-5)

    # bf16 MXU-feed knob (gated; f32 accumulator, f32 output), loose tolerance
    out_bf = jax.block_until_ready(
        matrix_factorize_forward(A, B, C, bias=True, compute_dtype=jnp.bfloat16))
    assert out_bf.dtype == jnp.float32
    assert jnp.allclose(out_bf, ref, atol=5e-2, rtol=5e-2)

    # --- unaligned case (hits the padding + slice path): M is (200, 300), dim=96
    xu, yu, du = 200, 300, 96
    A2 = _xavier_uniform(kA2, (xu, du))
    B2 = _xavier_uniform(kB2, (du, yu))
    C2 = _xavier_uniform(kC2, (xu, yu))
    out2 = jax.block_until_ready(matrix_factorize_forward(A2, B2, C2, bias=True))
    ref2 = jnp.dot(A2, B2, preferred_element_type=jnp.float32) + C2
    assert out2.shape == (xu, yu)
    assert jnp.allclose(out2, ref2, atol=1e-5, rtol=1e-5)

    # TODO(synk): fit() (AdamW training loop, masked loss, early stopping) is
    # host-side optimization code and is intentionally not a Pallas kernel.
    print("KERNEL_OK")
</pallas_src>

<mosaic_0001>
module attributes {stable_mosaic.version = 11 : i64} {
  func.func @kernel(%arg0: i32, %arg1: i32, %arg2: i32, %arg3: memref<128x128xf32, #tpu.memory_space<vmem>>, %arg4: memref<128x512xf32, #tpu.memory_space<vmem>>, %arg5: memref<128x512xf32, #tpu.memory_space<vmem>>, %arg6: memref<128x512xf32, #tpu.memory_space<vmem>>) attributes {dimension_semantics = [#tpu.dimension_semantics<parallel>, #tpu.dimension_semantics<parallel>, #tpu.dimension_semantics<arbitrary>], iteration_bounds = array<i64: 2, 1, 1>, scalar_prefetch = 0 : i64, scratch_operands = 0 : i64, tpu.core_type = #tpu.core_type<tc>, window_params = [{transform_indices = @transform_0, window_bounds = array<i64: 128, 128>}, {transform_indices = @transform_1, window_bounds = array<i64: 128, 512>}, {transform_indices = @transform_2, window_bounds = array<i64: 128, 512>}, {transform_indices = @transform_3, window_bounds = array<i64: 128, 512>}]} {
    %c0_i32 = arith.constant 0 : i32
    %0 = arith.cmpi eq, %arg2, %c0_i32 : i32
    %1 = arith.extui %0 : i1 to i32
    %c0_i32_0 = arith.constant 0 : i32
    %2 = arith.cmpi ne, %1, %c0_i32_0 : i32
    scf.if %2 {
      %c0_8 = arith.constant 0 : index
      %c0_9 = arith.constant 0 : index
      %9 = vector.load %arg5[%c0_8, %c0_9] : memref<128x512xf32, #tpu.memory_space<vmem>>, vector<128x512xf32>
      %c0_10 = arith.constant 0 : index
      %c0_11 = arith.constant 0 : index
      %10 = vector.load %arg6[%c0_10, %c0_11] : memref<128x512xf32, #tpu.memory_space<vmem>>, vector<128x512xf32>
      tpu.vector_store %arg6[%c0_10, %c0_11], %9 {strides = array<i32>} : memref<128x512xf32, #tpu.memory_space<vmem>>, vector<128x512xf32>,
    } else {
    }
    %c0 = arith.constant 0 : index
    %c0_1 = arith.constant 0 : index
    %3 = vector.load %arg6[%c0, %c0_1] : memref<128x512xf32, #tpu.memory_space<vmem>>, vector<128x512xf32>
    %c0_2 = arith.constant 0 : index
    %c0_3 = arith.constant 0 : index
    %4 = vector.load %arg3[%c0_2, %c0_3] : memref<128x128xf32, #tpu.memory_space<vmem>>, vector<128x128xf32>
    %c0_4 = arith.constant 0 : index
    %c0_5 = arith.constant 0 : index
    %5 = vector.load %arg4[%c0_4, %c0_5] : memref<128x512xf32, #tpu.memory_space<vmem>>, vector<128x512xf32>
    %cst = arith.constant dense<0.000000e+00> : vector<128x512xf32>
    %6 = tpu.matmul %4, %5, %cst {dimension_numbers = #tpu.dot_dimension_numbers<[1], [0], [0], [1], [0, 0, 1, 1], [], []>} : vector<128x128xf32>, vector<128x512xf32>, vector<128x512xf32> -> vector<128x512xf32>
    %7 = arith.addf %3, %6 : vector<128x512xf32>
    %c0_6 = arith.constant 0 : index
    %c0_7 = arith.constant 0 : index
    %8 = vector.load %arg6[%c0_6, %c0_7] : memref<128x512xf32, #tpu.memory_space<vmem>>, vector<128x512xf32>
    tpu.vector_store %arg6[%c0_6, %c0_7], %7 {strides = array<i32>} : memref<128x512xf32, #tpu.memory_space<vmem>>, vector<128x512xf32>,
    return
  }
  func.func @transform_0(%arg0: i32, %arg1: i32, %arg2: i32) -> (i32, i32) {
    %c0_i32 = arith.constant 0 : i32
    return %arg0, %arg2 : i32, i32
  }
  func.func @transform_1(%arg0: i32, %arg1: i32, %arg2: i32) -> (i32, i32) {
    %c0_i32 = arith.constant 0 : i32
    return %arg2, %arg1 : i32, i32
  }
  func.func @transform_2(%arg0: i32, %arg1: i32, %arg2: i32) -> (i32, i32) {
    %c0_i32 = arith.constant 0 : i32
    return %arg0, %arg1 : i32, i32
  }
  func.func @transform_3(%arg0: i32, %arg1: i32, %arg2: i32) -> (i32, i32) {
    %c0_i32 = arith.constant 0 : i32
    return %arg0, %arg1 : i32, i32
  }
}

</mosaic_0001>

<llo_original>
// kernel: tpu_custom_call.1
$region0: #{tpu_custom_call.1}
  #allocation0 [shape = 'u32[]', space=smem, size = 0x4, offset = 0x4, fixed_abs, tag = 'smem constant byte address 0x4 - core index']
  #allocation1 [shape = 'u32[144,128]{1,0:T(1,128)}', space=vmem, size = 0x12000, scoped, tag = 'internal scratch']
  %s0 = inlined_call_operand.hbm [shape: f32[256,128], index: 0, kind: input, shape index: {}]
  %s1 = inlined_call_operand.hbm [shape: f32[128,512], index: 1, kind: input, shape index: {}]
  %s2 = inlined_call_operand.hbm [shape: f32[256,512], index: 2, kind: input, shape index: {}]
  %s3 = inlined_call_operand.hbm [shape: f32[256,512], index: 3, kind: output, shape index: {}]
  %s4 = sld [smem:[#allocation0]]
  $region61: #{tpu_custom_call.1} parent=0
    _
  %s6 = ssub.s32 1, %s4
  %s7 = scalar_select 0, %s6, %s4
  $region1: #{tpu_custom_call.1} parent=0
    #allocation2 [shape = 'u8[131072]{0}', space=vmem, size = 0x20000, scoped, tag = 'input window, operand 0']
    #allocation3 [shape = 's32[2]{0}', space=sflag, size = 0x8, scoped, tag = 'scoped memory for tpu_custom_call.1']
    #allocation4 [shape = 's32[2]{0}', space=sflag, size = 0x8, scoped, tag = 'scoped memory for tpu_custom_call.1']
    #allocation5 [shape = 'u8[262144]{0}', space=vmem, size = 0x40000, scoped, tag = 'input window, operand 1, single buffered']
    #allocation6 [shape = 's32[1]{0}', space=sflag, size = 0x4, scoped, tag = 'scoped memory for tpu_custom_call.1']
    #allocation7 [shape = 'u8[524288]{0}', space=vmem, size = 0x80000, scoped, tag = 'input window, operand 2']
    #allocation8 [shape = 'u8[524288]{0}', space=vmem, size = 0x80000, scoped, tag = 'output window, operand 0']
    %8 = vsyncpa [#allocation3], 0
    %s9 = scalar_lea.sflag [#allocation3], 1
    %10 = vsyncpa %s9, 0
    %11 = vsyncpa [#allocation6], 0
    %12 = vsyncpa [#allocation4], 0
    %s13 = scalar_lea.sflag [#allocation4], 1
    %14 = vsyncpa %s13, 0
    loop: start=0, step=1, limit=4
    $region2: #{tpu_custom_call.1} parent=1 // loop_pre_header
      _
    $region3: #{tpu_custom_call.1} parent=1 // loop_header
      %s16 = sphi 0, %s20
      %p17 = scmp.ge.s32.totalorder %s16, 4
      %s23 = sphi 0, %s42
      %s24 = sphi 0, %s38
      %s25 = sphi 0, %s34
      %s26 = sphi 0, %s23
      %s27 = sphi 0, %s24
      %s28 = sphi 0, %s25
      %s29 = sphi 0, %s26
      %s30 = sphi 0, %s27
      %s31 = sphi 0, %s28
      %s47 = sphi 0, %s49
      %s50 = sphi 0, %s47
      %s51 = sphi 0, %s50
      %s67 = sphi 0, %s51
      %s75 = sphi 0, %s77
      %s78 = sphi 0, %s75
      %s79 = sphi 0, %s78
      %s95 = sphi 0, %s79
      %s103 = sphi 0, %s105
      %s106 = sphi 0, %s103
      %s107 = sphi 0, %s106
      %s123 = sphi 0, %s107
      %s131 = sphi 0, %s133
      %s134 = sphi 0, %s131
      %s135 = sphi 0, %s134
      %s151 = sphi 0, %s135
    $region4: #{tpu_custom_call.1} parent=1 // loop_header_branch
      %19 = sbr.rel (%p17) target = $region8
    $region5: #{tpu_custom_call.1} parent=1 // loop_body
      %s21 = ssub.s32 %s16, 1
      %s22 = ssub.s32 %s16, 2
      %s32 = sadd.s32 1, %s25
      %p33 = scmp.ge.s32.totalorder %s32, 1
      %s34 = scalar_select %p33, 0, %s32
      %s35 = sadd.s32 1, %s24
      %s36 = scalar_select %p33, %s35, %s24
      %p37 = scmp.ge.s32.totalorder %s36, 1
      %s38 = scalar_select %p37, 0, %s36
      %s39 = sadd.s32 1, %s23
      %s40 = scalar_select %p37, %s39, %s23
      %p41 = scmp.ge.s32.totalorder %s40, 2
      %s42 = scalar_select %p41, 0, %s40
      %s43 = ssub.s32 %s23, %s42
      %s44 = ssub.s32 %s25, %s34
      %s45 = sor.u32 %s43, %s44
      %p46 = scmp.eq.s32.totalorder %s45, 0
      %s48 = sadd.s32 %s47, 1
      %s49 = scalar_select %p46, %s47, %s48
      %p52 = pneg %p46
      %p53 = scmp.eq.s32.totalorder %s16, 1
      %p54 = por %p52, %p53
      %p55 = scmp.ne.s32.totalorder %s47, %s50
      %p56 = scmp.eq.s32.totalorder %s16, 0
      %p57 = por %p55, %p56
      %p58 = scmp.ne.s32.totalorder %s47, %s50
      %p59 = scmp.eq.s32.totalorder %s21, 1
      %p60 = por %p58, %p59
      %p61 = scmp.ne.s32.totalorder %s50, %s51
      %p62 = scmp.eq.s32.totalorder %s21, 0
      %p63 = por %p61, %p62
      %p64 = scmp.ne.s32.totalorder %s50, %s51
      %p65 = scmp.eq.s32.totalorder %s22, 1
      %p66 = por %p64, %p65
      %p68 = scmp.ne.s32.totalorder %s51, %s67
      %p69 = scmp.eq.s32.totalorder %s22, 0
      %p70 = por %p68, %p69
      %s71 = ssub.s32 %s25, %s34
      %s72 = ssub.s32 %s24, %s38
      %s73 = sor.u32 %s71, %s72
      %p74 = scmp.eq.s32.totalorder %s73, 0
      %s76 = sadd.s32 %s75, 1
      %s77 = scalar_select %p74, %s75, %s76
      %p80 = pneg %p74
      %p81 = scmp.eq.s32.totalorder %s16, 1
      %p82 = por %p80, %p81
      %p83 = scmp.ne.s32.totalorder %s75, %s78
      %p84 = scmp.eq.s32.totalorder %s16, 0
      %p85 = por %p83, %p84
      %p86 = scmp.ne.s32.totalorder %s75, %s78
      %p87 = scmp.eq.s32.totalorder %s21, 1
      %p88 = por %p86, %p87
      %p89 = scmp.ne.s32.totalorder %s78, %s79
      %p90 = scmp.eq.s32.totalorder %s21, 0
      %p91 = por %p89, %p90
      %p92 = scmp.ne.s32.totalorder %s78, %s79
      %p93 = scmp.eq.s32.totalorder %s22, 1
      %p94 = por %p92, %p93
      %p96 = scmp.ne.s32.totalorder %s79, %s95
      %p97 = scmp.eq.s32.totalorder %s22, 0
      %p98 = por %p96, %p97
      %s99 = ssub.s32 %s23, %s42
      %s100 = ssub.s32 %s24, %s38
      %s101 = sor.u32 %s99, %s100
      %p102 = scmp.eq.s32.totalorder %s101, 0
      %s104 = sadd.s32 %s103, 1
      %s105 = scalar_select %p102, %s103, %s104
      %p108 = pneg %p102
      %p109 = scmp.eq.s32.totalorder %s16, 1
      %p110 = por %p108, %p109
      %p111 = scmp.ne.s32.totalorder %s103, %s106
      %p112 = scmp.eq.s32.totalorder %s16, 0
      %p113 = por %p111, %p112
      %p114 = scmp.ne.s32.totalorder %s103, %s106
      %p115 = scmp.eq.s32.totalorder %s21, 1
      %p116 = por %p114, %p115
      %p117 = scmp.ne.s32.totalorder %s106, %s107
      %p118 = scmp.eq.s32.totalorder %s21, 0
      %p119 = por %p117, %p118
      %p120 = scmp.ne.s32.totalorder %s106, %s107
      %p121 = scmp.eq.s32.totalorder %s22, 1
      %p122 = por %p120, %p121
      %p124 = scmp.ne.s32.totalorder %s107, %s123
      %p125 = scmp.eq.s32.totalorder %s22, 0
      %p126 = por %p124, %p125
      %s127 = ssub.s32 %s23, %s42
      %s128 = ssub.s32 %s24, %s38
      %s129 = sor.u32 %s127, %s128
      %p130 = scmp.eq.s32.totalorder %s129, 0
      %s132 = sadd.s32 %s131, 1
      %s133 = scalar_select %p130, %s131, %s132
      %p136 = pneg %p130
      %p137 = scmp.eq.s32.totalorder %s16, 1
      %p138 = por %p136, %p137
      %p139 = scmp.ne.s32.totalorder %s131, %s134
      %p140 = scmp.eq.s32.totalorder %s16, 0
      %p141 = por %p139, %p140
      %p142 = scmp.ne.s32.totalorder %s131, %s134
      %p143 = scmp.eq.s32.totalorder %s21, 1
      %p144 = por %p142, %p143
      %p145 = scmp.ne.s32.totalorder %s134, %s135
      %p146 = scmp.eq.s32.totalorder %s21, 0
      %p147 = por %p145, %p146
      %p148 = scmp.ne.s32.totalorder %s134, %s135
      %p149 = scmp.eq.s32.totalorder %s22, 1
      %p150 = por %p148, %p149
      %p152 = scmp.ne.s32.totalorder %s135, %s151
      %p153 = scmp.eq.s32.totalorder %s22, 0
      %p154 = por %p152, %p153
      %p155 = scmp.le.s32.totalorder 1, %s16
      %p156 = scmp.lt.s32.totalorder %s16, 3
      %p157 = pnand %p155, %p156
      %p158 = pneg %p157
      // Predicated region
      $region9: #{tpu_custom_call.1} parent=5 // pred_check
        _
      $region10: #{tpu_custom_call.1} parent=5 // pred_check_branch
        %160 = sbr.rel (%p157) target = $region12
      $region11: #{tpu_custom_call.1} parent=5 // pred_region
        %s161 = ssub.s32 %s16, 1
        // Predicated region
        $region13: #{tpu_custom_call.1} parent=11 // pred_check
          %p162 = pneg %p91
        $region14: #{tpu_custom_call.1} parent=11 // pred_check_branch
          %164 = sbr.rel (%p162) target = $region16
        $region15: #{tpu_custom_call.1} parent=11 // pred_region
          %s165 = smul.u32 16, %s28
          %s166 = smul.u32 4, %s27
          %s168 = ssub.s32 8192, 8192
          %169 = vsyncadd [#allocation6], %s168
          %s170 = smul.addr %s165, 4
          %s171 = sadd.s32 %s166, %s170
          %s172 = smul.addr %s171, 128
          %s173 = scalar_lea.hbm %s1, %s172
          %s174 = sshll.u32 [#allocation5], 4
          %s175 = int_to_ptr.vmem [resolvable:$true] %s174
          %180 = dma.hbm_to_vmem [thread:$0]  %s173, 8192, %s175, [#allocation6], 512, 512, 32
        $region16: #{tpu_custom_call.1} parent=11 // pred_fallthru
          _
      $region12: #{tpu_custom_call.1} parent=5 // pred_fallthru
        _
      %p181 = scmp.lt.s32.totalorder %s16, 2
      // Predicated region
      $region17: #{tpu_custom_call.1} parent=5 // pred_check
        %p182 = pneg %p181
      $region18: #{tpu_custom_call.1} parent=5 // pred_check_branch
        %184 = sbr.rel (%p182) target = $region20
      $region19: #{tpu_custom_call.1} parent=5 // pred_region
        // Predicated region
        $region21: #{tpu_custom_call.1} parent=19 // pred_check
          %p185 = pneg %p57
        $region22: #{tpu_custom_call.1} parent=19 // pred_check_branch
          %187 = sbr.rel (%p185) target = $region24
        $region23: #{tpu_custom_call.1} parent=19 // pred_region
          %s188 = sand.u32 %s16, 1
          %s189 = scalar_lea.sflag [#allocation3], %s188
          %s190 = sand.u32 %s47, 1
          %s191 = smul.addr %s190, 128
          %s192 = scalar_lea.vmem [#allocation2], %s191
          %s193 = smul.u32 16, %s23
          %s195 = ssub.s32 2048, 2048
          %196 = vsyncadd %s189, %s195
          %s197 = sadd.s32 %s25, %s193
          %s198 = smul.addr %s197, 128
          %s199 = scalar_lea.hbm %s0, %s198
          %s200 = sshll.u32 %s192, 4
          %s201 = int_to_ptr.vmem [resolvable:$true] %s200
          %206 = dma.hbm_to_vmem [thread:$0]  %s199, 2048, %s201, %s189, 128, 128, 8
        $region24: #{tpu_custom_call.1} parent=19 // pred_fallthru
          _
        // Predicated region
        $region25: #{tpu_custom_call.1} parent=19 // pred_check
          %p207 = pneg %p113
        $region26: #{tpu_custom_call.1} parent=19 // pred_check_branch
          %209 = sbr.rel (%p207) target = $region28
        $region27: #{tpu_custom_call.1} parent=19 // pred_region
          %s210 = sand.u32 %s16, 1
          %s211 = scalar_lea.sflag [#allocation3], %s210
          %s212 = sand.u32 %s103, 1
          %s213 = smul.addr %s212, 512
          %s214 = scalar_lea.vmem [#allocation7], %s213
          %s215 = smul.u32 16, %s23
          %s216 = smul.u32 4, %s24
          %s218 = ssub.s32 8192, 8192
          %219 = vsyncadd %s211, %s218
          %s220 = smul.addr %s215, 4
          %s221 = sadd.s32 %s216, %s220
          %s222 = smul.addr %s221, 128
          %s223 = scalar_lea.hbm %s2, %s222
          %s224 = sshll.u32 %s214, 4
          %s225 = int_to_ptr.vmem [resolvable:$true] %s224
          %230 = dma.hbm_to_vmem [thread:$0]  %s223, 8192, %s225, %s211, 512, 512, 32
        $region28: #{tpu_custom_call.1} parent=19 // pred_fallthru
          _
      $region20: #{tpu_custom_call.1} parent=5 // pred_fallthru
        _
      %p231 = scmp.le.s32.totalorder 1, %s16
      %p232 = scmp.lt.s32.totalorder %s16, 3
      %p233 = pnand %p231, %p232
      %p234 = pneg %p233
      // Predicated region
      $region29: #{tpu_custom_call.1} parent=5 // pred_check
        _
      $region30: #{tpu_custom_call.1} parent=5 // pred_check_branch
        %236 = sbr.rel (%p233) target = $region32
      $region31: #{tpu_custom_call.1} parent=5 // pred_region
        %s237 = ssub.s32 %s16, 1
        %s238 = sand.u32 %s21, 1
        %s239 = scalar_lea.sflag [#allocation3], %s238
        %s240 = sand.u32 %s50, 1
        %s241 = smul.addr %s240, 128
        %s242 = scalar_lea.vmem [#allocation2], %s241
        // Predicated region
        $region33: #{tpu_custom_call.1} parent=31 // pred_check
          %p243 = pneg %p63
        $region34: #{tpu_custom_call.1} parent=31 // pred_check_branch
          %245 = sbr.rel (%p243) target = $region36
        $region35: #{tpu_custom_call.1} parent=31 // pred_region
          %246 = dma.done %s239, 2048
        $region36: #{tpu_custom_call.1} parent=31 // pred_fallthru
          _
        // Predicated region
        $region37: #{tpu_custom_call.1} parent=31 // pred_check
          %p247 = pneg %p91
        $region38: #{tpu_custom_call.1} parent=31 // pred_check_branch
          %249 = sbr.rel (%p247) target = $region40
        $region39: #{tpu_custom_call.1} parent=31 // pred_region
          %250 = dma.done [#allocation6], 8192
        $region40: #{tpu_custom_call.1} parent=31 // pred_fallthru
          _
        %s251 = sand.u32 %s21, 1
        %s252 = scalar_lea.sflag [#allocation3], %s251
        %s253 = sand.u32 %s106, 1
        %s254 = smul.addr %s253, 512
        %s255 = scalar_lea.vmem [#allocation7], %s254
        // Predicated region
        $region41: #{tpu_custom_call.1} parent=31 // pred_check
          %p256 = pneg %p119
        $region42: #{tpu_custom_call.1} parent=31 // pred_check_branch
          %258 = sbr.rel (%p256) target = $region44
        $region43: #{tpu_custom_call.1} parent=31 // pred_region
          %259 = dma.done %s252, 8192
        $region44: #{tpu_custom_call.1} parent=31 // pred_fallthru
          _
        %s260 = sand.u32 %s21, 1
        %s261 = scalar_lea.sflag [#allocation3], %s260
        %s262 = sand.u32 %s50, 1
        %s263 = smul.addr %s262, 128
        %s264 = scalar_lea.vmem [#allocation2], %s263
        %p265 = pneg %p63
        %p266 = pneg %p60
        %p267 = pneg %p91
        %p268 = pneg %p88
        %s269 = sand.u32 %s21, 1
        %s270 = scalar_lea.sflag [#allocation3], %s269
        %s271 = sand.u32 %s106, 1
        %s272 = smul.addr %s271, 512
        %s273 = scalar_lea.vmem [#allocation7], %s272
        %p274 = pneg %p119
        %p275 = pneg %p116
        %p276 = pneg %p147
        %p277 = pneg %p144
        %s278 = sand.u32 %s134, 1
        %s279 = scalar_lea.sflag [#allocation4], %s278
        %s280 = sand.u32 %s134, 1
        %s281 = smul.addr %s280, 512
        %s282 = scalar_lea.vmem [#allocation8], %s281
        %s283 = smul.u32 16, %s26
        %s284 = smul.u32 16, %s28
        %s285 = smul.u32 4, %s27
        %s286 = smul.u32 16, %s26
        %s287 = smul.u32 4, %s27
        %s288 = smul.u32 16, %s26
        %s289 = smul.u32 4, %s27
        %p290 = scmp.eq.s32.totalorder %s28, 0
        // Predicated region
        $region45: #{tpu_custom_call.1} parent=31 // pred_check
          %p291 = pneg %p290
        $region46: #{tpu_custom_call.1} parent=31 // pred_check_branch
          %293 = sbr.rel (%p291) target = $region48
        $region47: #{tpu_custom_call.1} parent=31 // pred_region
          %v294 = vld [vmem:[%s255] sm:$0xff]
          %v295 = vld [vmem:[%s255 + $0x8] sm:$0xff]
          %v296 = vld [vmem:[%s255 + $0x10] sm:$0xff]
          %v297 = vld [vmem:[%s255 + $0x18] sm:$0xff]
          %v298 = vld [vmem:[%s255 + $0x20] sm:$0xff]
          %v299 = vld [vmem:[%s255 + $0x28] sm:$0xff]
          %v300 = vld [vmem:[%s255 + $0x30] sm:$0xff]
          %v301 = vld [vmem:[%s255 + $0x38] sm:$0xff]
          %v302 = vld [vmem:[%s255 + $0x40] sm:$0xff]
          %v303 = vld [vmem:[%s255 + $0x48] sm:$0xff]
          %v304 = vld [vmem:[%s255 + $0x50] sm:$0xff]
          %v305 = vld [vmem:[%s255 + $0x58] sm:$0xff]
          %v306 = vld [vmem:[%s255 + $0x60] sm:$0xff]
          %v307 = vld [vmem:[%s255 + $0x68] sm:$0xff]
          %v308 = vld [vmem:[%s255 + $0x70] sm:$0xff]
          %v309 = vld [vmem:[%s255 + $0x78] sm:$0xff]
          %v310 = vld [vmem:[%s255 + $0x80] sm:$0xff]
          %v311 = vld [vmem:[%s255 + $0x88] sm:$0xff]
          %v312 = vld [vmem:[%s255 + $0x90] sm:$0xff]
          %v313 = vld [vmem:[%s255 + $0x98] sm:$0xff]
          %v314 = vld [vmem:[%s255 + $0xa0] sm:$0xff]
          %v315 = vld [vmem:[%s255 + $0xa8] sm:$0xff]
          %v316 = vld [vmem:[%s255 + $0xb0] sm:$0xff]
          %v317 = vld [vmem:[%s255 + $0xb8] sm:$0xff]
          %v318 = vld [vmem:[%s255 + $0xc0] sm:$0xff]
          %v319 = vld [vmem:[%s255 + $0xc8] sm:$0xff]
          %v320 = vld [vmem:[%s255 + $0xd0] sm:$0xff]
          %v321 = vld [vmem:[%s255 + $0xd8] sm:$0xff]
          %v322 = vld [vmem:[%s255 + $0xe0] sm:$0xff]
          %v323 = vld [vmem:[%s255 + $0xe8] sm:$0xff]
          %v324 = vld [vmem:[%s255 + $0xf0] sm:$0xff]
          %v325 = vld [vmem:[%s255 + $0xf8] sm:$0xff]
          %v326 = vld [vmem:[%s255 + $0x100] sm:$0xff]
          %v327 = vld [vmem:[%s255 + $0x108] sm:$0xff]
          %v328 = vld [vmem:[%s255 + $0x110] sm:$0xff]
          %v329 = vld [vmem:[%s255 + $0x118] sm:$0xff]
          %v330 = vld [vmem:[%s255 + $0x120] sm:$0xff]
          %v331 = vld [vmem:[%s255 + $0x128] sm:$0xff]
          %v332 = vld [vmem:[%s255 + $0x130] sm:$0xff]
          %v333 = vld [vmem:[%s255 + $0x138] sm:$0xff]
          %v334 = vld [vmem:[%s255 + $0x140] sm:$0xff]
          %v335 = vld [vmem:[%s255 + $0x148] sm:$0xff]
          %v336 = vld [vmem:[%s255 + $0x150] sm:$0xff]
          %v337 = vld [vmem:[%s255 + $0x158] sm:$0xff]
          %v338 = vld [vmem:[%s255 + $0x160] sm:$0xff]
          %v339 = vld [vmem:[%s255 + $0x168] sm:$0xff]
          %v340 = vld [vmem:[%s255 + $0x170] sm:$0xff]
          %v341 = vld [vmem:[%s255 + $0x178] sm:$0xff]
          %v342 = vld [vmem:[%s255 + $0x180] sm:$0xff]
          %v343 = vld [vmem:[%s255 + $0x188] sm:$0xff]
          %v344 = vld [vmem:[%s255 + $0x190] sm:$0xff]
          %v345 = vld [vmem:[%s255 + $0x198] sm:$0xff]
          %v346 = vld [vmem:[%s255 + $0x1a0] sm:$0xff]
          %v347 = vld [vmem:[%s255 + $0x1a8] sm:$0xff]
          %v348 = vld [vmem:[%s255 + $0x1b0] sm:$0xff]
          %v349 = vld [vmem:[%s255 + $0x1b8] sm:$0xff]
          %v350 = vld [vmem:[%s255 + $0x1c0] sm:$0xff]
          %v351 = vld [vmem:[%s255 + $0x1c8] sm:$0xff]
          %v352 = vld [vmem:[%s255 + $0x1d0] sm:$0xff]
          %v353 = vld [vmem:[%s255 + $0x1d8] sm:$0xff]
          %v354 = vld [vmem:[%s255 + $0x1e0] sm:$0xff]
          %v355 = vld [vmem:[%s255 + $0x1e8] sm:$0xff]
          %v356 = vld [vmem:[%s255 + $0x1f0] sm:$0xff]
          %v357 = vld [vmem:[%s255 + $0x1f8] sm:$0xff]
          %358 = vst [vmem:[%s282] sm:$0xff] %v294
          %359 = vst [vmem:[%s282 + $0x8] sm:$0xff] %v295
          %360 = vst [vmem:[%s282 + $0x10] sm:$0xff] %v296
          %361 = vst [vmem:[%s282 + $0x18] sm:$0xff] %v297
          %362 = vst [vmem:[%s282 + $0x20] sm:$0xff] %v298
          %363 = vst [vmem:[%s282 + $0x28] sm:$0xff] %v299
          %364 = vst [vmem:[%s282 + $0x30] sm:$0xff] %v300
          %365 = vst [vmem:[%s282 + $0x38] sm:$0xff] %v301
          %366 = vst [vmem:[%s282 + $0x40] sm:$0xff] %v302
          %367 = vst [vmem:[%s282 + $0x48] sm:$0xff] %v303
          %368 = vst [vmem:[%s282 + $0x50] sm:$0xff] %v304
          %369 = vst [vmem:[%s282 + $0x58] sm:$0xff] %v305
          %370 = vst [vmem:[%s282 + $0x60] sm:$0xff] %v306
          %371 = vst [vmem:[%s282 + $0x68] sm:$0xff] %v307
          %372 = vst [vmem:[%s282 + $0x70] sm:$0xff] %v308
          %373 = vst [vmem:[%s282 + $0x78] sm:$0xff] %v309
          %374 = vst [vmem:[%s282 + $0x80] sm:$0xff] %v310
          %375 = vst [vmem:[%s282 + $0x88] sm:$0xff] %v311
          %376 = vst [vmem:[%s282 + $0x90] sm:$0xff] %v312
          %377 = vst [vmem:[%s282 + $0x98] sm:$0xff] %v313
          %378 = vst [vmem:[%s282 + $0xa0] sm:$0xff] %v314
          %379 = vst [vmem:[%s282 + $0xa8] sm:$0xff] %v315
          %380 = vst [vmem:[%s282 + $0xb0] sm:$0xff] %v316
          %381 = vst [vmem:[%s282 + $0xb8] sm:$0xff] %v317
          %382 = vst [vmem:[%s282 + $0xc0] sm:$0xff] %v318
          %383 = vst [vmem:[%s282 + $0xc8] sm:$0xff] %v319
          %384 = vst [vmem:[%s282 + $0xd0] sm:$0xff] %v320
          %385 = vst [vmem:[%s282 + $0xd8] sm:$0xff] %v321
          %386 = vst [vmem:[%s282 + $0xe0] sm:$0xff] %v322
          %387 = vst [vmem:[%s282 + $0xe8] sm:$0xff] %v323
          %388 = vst [vmem:[%s282 + $0xf0] sm:$0xff] %v324
          %389 = vst [vmem:[%s282 + $0xf8] sm:$0xff] %v325
          %390 = vst [vmem:[%s282 + $0x100] sm:$0xff] %v326
          %391 = vst [vmem:[%s282 + $0x108] sm:$0xff] %v327
          %392 = vst [vmem:[%s282 + $0x110] sm:$0xff] %v328
          %393 = vst [vmem:[%s282 + $0x118] sm:$0xff] %v329
          %394 = vst [vmem:[%s282 + $0x120] sm:$0xff] %v330
          %395 = vst [vmem:[%s282 + $0x128] sm:$0xff] %v331
          %396 = vst [vmem:[%s282 + $0x130] sm:$0xff] %v332
          %397 = vst [vmem:[%s282 + $0x138] sm:$0xff] %v333
          %398 = vst [vmem:[%s282 + $0x140] sm:$0xff] %v334
          %399 = vst [vmem:[%s282 + $0x148] sm:$0xff] %v335
          %400 = vst [vmem:[%s282 + $0x150] sm:$0xff] %v336
          %401 = vst [vmem:[%s282 + $0x158] sm:$0xff] %v337
          %402 = vst [vmem:[%s282 + $0x160] sm:$0xff] %v338
          %403 = vst [vmem:[%s282 + $0x168] sm:$0xff] %v339
          %404 = vst [vmem:[%s282 + $0x170] sm:$0xff] %v340
          %405 = vst [vmem:[%s282 + $0x178] sm:$0xff] %v341
          %406 = vst [vmem:[%s282 + $0x180] sm:$0xff] %v342
          %407 = vst [vmem:[%s282 + $0x188] sm:$0xff] %v343
          %408 = vst [vmem:[%s282 + $0x190] sm:$0xff] %v344
          %409 = vst [vmem:[%s282 + $0x198] sm:$0xff] %v345
          %410 = vst [vmem:[%s282 + $0x1a0] sm:$0xff] %v346
          %411 = vst [vmem:[%s282 + $0x1a8] sm:$0xff] %v347
          %412 = vst [vmem:[%s282 + $0x1b0] sm:$0xff] %v348
          %413 = vst [vmem:[%s282 + $0x1b8] sm:$0xff] %v349
          %414 = vst [vmem:[%s282 + $0x1c0] sm:$0xff] %v350
          %415 = vst [vmem:[%s282 + $0x1c8] sm:$0xff] %v351
          %416 = vst [vmem:[%s282 + $0x1d0] sm:$0xff] %v352
          %417 = vst [vmem:[%s282 + $0x1d8] sm:$0xff] %v353
          %418 = vst [vmem:[%s282 + $0x1e0] sm:$0xff] %v354
          %419 = vst [vmem:[%s282 + $0x1e8] sm:$0xff] %v355
          %420 = vst [vmem:[%s282 + $0x1f0] sm:$0xff] %v356
          %421 = vst [vmem:[%s282 + $0x1f8] sm:$0xff] %v357
        $region48: #{tpu_custom_call.1} parent=31 // pred_fallthru
          _
        %v422 = vld [vmem:[%s282] sm:$0xff]
        %v423 = vld [vmem:[%s282 + $0x8] sm:$0xff]
        %v424 = vld [vmem:[%s282 + $0x10] sm:$0xff]
        %v425 = vld [vmem:[%s282 + $0x18] sm:$0xff]
        %v426 = vld [vmem:[%s282 + $0x20] sm:$0xff]
        %v427 = vld [vmem:[%s282 + $0x28] sm:$0xff]
        %v428 = vld [vmem:[%s282 + $0x30] sm:$0xff]
        %v429 = vld [vmem:[%s282 + $0x38] sm:$0xff]
        %v430 = vld [vmem:[%s282 + $0x40] sm:$0xff]
        %v431 = vld [vmem:[%s282 + $0x48] sm:$0xff]
        %v432 = vld [vmem:[%s282 + $0x50] sm:$0xff]
        %v433 = vld [vmem:[%s282 + $0x58] sm:$0xff]
        %v434 = vld [vmem:[%s282 + $0x60] sm:$0xff]
        %v435 = vld [vmem:[%s282 + $0x68] sm:$0xff]
        %v436 = vld [vmem:[%s282 + $0x70] sm:$0xff]
        %v437 = vld [vmem:[%s282 + $0x78] sm:$0xff]
        %v438 = vld [vmem:[%s282 + $0x80] sm:$0xff]
        %v439 = vld [vmem:[%s282 + $0x88] sm:$0xff]
        %v440 = vld [vmem:[%s282 + $0x90] sm:$0xff]
        %v441 = vld [vmem:[%s282 + $0x98] sm:$0xff]
        %v442 = vld [vmem:[%s282 + $0xa0] sm:$0xff]
        %v443 = vld [vmem:[%s282 + $0xa8] sm:$0xff]
        %v444 = vld [vmem:[%s282 + $0xb0] sm:$0xff]
        %v445 = vld [vmem:[%s282 + $0xb8] sm:$0xff]
        %v446 = vld [vmem:[%s282 + $0xc0] sm:$0xff]
        %v447 = vld [vmem:[%s282 + $0xc8] sm:$0xff]
        %v448 = vld [vmem:[%s282 + $0xd0] sm:$0xff]
        %v449 = vld [vmem:[%s282 + $0xd8] sm:$0xff]
        %v450 = vld [vmem:[%s282 + $0xe0] sm:$0xff]
        %v451 = vld [vmem:[%s282 + $0xe8] sm:$0xff]
        %v452 = vld [vmem:[%s282 + $0xf0] sm:$0xff]
        %v453 = vld [vmem:[%s282 + $0xf8] sm:$0xff]
        %v454 = vld [vmem:[%s282 + $0x100] sm:$0xff]
        %v455 = vld [vmem:[%s282 + $0x108] sm:$0xff]
        %v456 = vld [vmem:[%s282 + $0x110] sm:$0xff]
        %v457 = vld [vmem:[%s282 + $0x118] sm:$0xff]
        %v458 = vld [vmem:[%s282 + $0x120] sm:$0xff]
        %v459 = vld [vmem:[%s282 + $0x128] sm:$0xff]
        %v460 = vld [vmem:[%s282 + $0x130] sm:$0xff]
        %v461 = vld [vmem:[%s282 + $0x138] sm:$0xff]
        %v462 = vld [vmem:[%s282 + $0x140] sm:$0xff]
        %v463 = vld [vmem:[%s282 + $0x148] sm:$0xff]
        %v464 = vld [vmem:[%s282 + $0x150] sm:$0xff]
        %v465 = vld [vmem:[%s282 + $0x158] sm:$0xff]
        %v466 = vld [vmem:[%s282 + $0x160] sm:$0xff]
        %v467 = vld [vmem:[%s282 + $0x168] sm:$0xff]
        %v468 = vld [vmem:[%s282 + $0x170] sm:$0xff]
        %v469 = vld [vmem:[%s282 + $0x178] sm:$0xff]
        %v470 = vld [vmem:[%s282 + $0x180] sm:$0xff]
        %v471 = vld [vmem:[%s282 + $0x188] sm:$0xff]
        %v472 = vld [vmem:[%s282 + $0x190] sm:$0xff]
        %v473 = vld [vmem:[%s282 + $0x198] sm:$0xff]
        %v474 = vld [vmem:[%s282 + $0x1a0] sm:$0xff]
        %v475 = vld [vmem:[%s282 + $0x1a8] sm:$0xff]
        %v476 = vld [vmem:[%s282 + $0x1b0] sm:$0xff]
        %v477 = vld [vmem:[%s282 + $0x1b8] sm:$0xff]
        %v478 = vld [vmem:[%s282 + $0x1c0] sm:$0xff]
        %v479 = vld [vmem:[%s282 + $0x1c8] sm:$0xff]
        %v480 = vld [vmem:[%s282 + $0x1d0] sm:$0xff]
        %v481 = vld [vmem:[%s282 + $0x1d8] sm:$0xff]
        %v482 = vld [vmem:[%s282 + $0x1e0] sm:$0xff]
        %v483 = vld [vmem:[%s282 + $0x1e8] sm:$0xff]
        %v484 = vld [vmem:[%s282 + $0x1f0] sm:$0xff]
        %v485 = vld [vmem:[%s282 + $0x1f8] sm:$0xff]
        %v486 = vld [vmem:[%s242] sm:$0xff]
        %v487 = vld [vmem:[%s242 + $0x8] sm:$0xff]
        %v488 = vld [vmem:[%s242 + $0x10] sm:$0xff]
        %v489 = vld [vmem:[%s242 + $0x18] sm:$0xff]
        %v490 = vld [vmem:[%s242 + $0x20] sm:$0xff]
        %v491 = vld [vmem:[%s242 + $0x28] sm:$0xff]
        %v492 = vld [vmem:[%s242 + $0x30] sm:$0xff]
        %v493 = vld [vmem:[%s242 + $0x38] sm:$0xff]
        %v494 = vld [vmem:[%s242 + $0x40] sm:$0xff]
        %v495 = vld [vmem:[%s242 + $0x48] sm:$0xff]
        %v496 = vld [vmem:[%s242 + $0x50] sm:$0xff]
        %v497 = vld [vmem:[%s242 + $0x58] sm:$0xff]
        %v498 = vld [vmem:[%s242 + $0x60] sm:$0xff]
        %v499 = vld [vmem:[%s242 + $0x68] sm:$0xff]
        %v500 = vld [vmem:[%s242 + $0x70] sm:$0xff]
        %v501 = vld [vmem:[%s242 + $0x78] sm:$0xff]
        %v502 = vld [vmem:[#allocation5] sm:$0xff]
        %v503 = vld [vmem:[#allocation5 + $0x8] sm:$0xff]
        %v504 = vld [vmem:[#allocation5 + $0x10] sm:$0xff]
        %v505 = vld [vmem:[#allocation5 + $0x18] sm:$0xff]
        %v506 = vld [vmem:[#allocation5 + $0x20] sm:$0xff]
        %v507 = vld [vmem:[#allocation5 + $0x28] sm:$0xff]
        %v508 = vld [vmem:[#allocation5 + $0x30] sm:$0xff]
        %v509 = vld [vmem:[#allocation5 + $0x38] sm:$0xff]
        %v510 = vld [vmem:[#allocation5 + $0x40] sm:$0xff]
        %v511 = vld [vmem:[#allocation5 + $0x48] sm:$0xff]
        %v512 = vld [vmem:[#allocation5 + $0x50] sm:$0xff]
        %v513 = vld [vmem:[#allocation5 + $0x58] sm:$0xff]
        %v514 = vld [vmem:[#allocation5 + $0x60] sm:$0xff]
        %v515 = vld [vmem:[#allocation5 + $0x68] sm:$0xff]
        %v516 = vld [vmem:[#allocation5 + $0x70] sm:$0xff]
        %v517 = vld [vmem:[#allocation5 + $0x78] sm:$0xff]
        %v518 = vld [vmem:[#allocation5 + $0x80] sm:$0xff]
        %v519 = vld [vmem:[#allocation5 + $0x88] sm:$0xff]
        %v520 = vld [vmem:[#allocation5 + $0x90] sm:$0xff]
        %v521 = vld [vmem:[#allocation5 + $0x98] sm:$0xff]
        %v522 = vld [vmem:[#allocation5 + $0xa0] sm:$0xff]
        %v523 = vld [vmem:[#allocation5 + $0xa8] sm:$0xff]
        %v524 = vld [vmem:[#allocation5 + $0xb0] sm:$0xff]
        %v525 = vld [vmem:[#allocation5 + $0xb8] sm:$0xff]
        %v526 = vld [vmem:[#allocation5 + $0xc0] sm:$0xff]
        %v527 = vld [vmem:[#allocation5 + $0xc8] sm:$0xff]
        %v528 = vld [vmem:[#allocation5 + $0xd0] sm:$0xff]
        %v529 = vld [vmem:[#allocation5 + $0xd8] sm:$0xff]
        %v530 = vld [vmem:[#allocation5 + $0xe0] sm:$0xff]
        %v531 = vld [vmem:[#allocation5 + $0xe8] sm:$0xff]
        %v532 = vld [vmem:[#allocation5 + $0xf0] sm:$0xff]
        %v533 = vld [vmem:[#allocation5 + $0xf8] sm:$0xff]
        %v534 = vld [vmem:[#allocation5 + $0x100] sm:$0xff]
        %v535 = vld [vmem:[#allocation5 + $0x108] sm:$0xff]
        %v536 = vld [vmem:[#allocation5 + $0x110] sm:$0xff]
        %v537 = vld [vmem:[#allocation5 + $0x118] sm:$0xff]
        %v538 = vld [vmem:[#allocation5 + $0x120] sm:$0xff]
        %v539 = vld [vmem:[#allocation5 + $0x128] sm:$0xff]
        %v540 = vld [vmem:[#allocation5 + $0x130] sm:$0xff]
        %v541 = vld [vmem:[#allocation5 + $0x138] sm:$0xff]
        %v542 = vld [vmem:[#allocation5 + $0x140] sm:$0xff]
        %v543 = vld [vmem:[#allocation5 + $0x148] sm:$0xff]
        %v544 = vld [vmem:[#allocation5 + $0x150] sm:$0xff]
        %v545 = vld [vmem:[#allocation5 + $0x158] sm:$0xff]
        %v546 = vld [vmem:[#allocation5 + $0x160] sm:$0xff]
        %v547 = vld [vmem:[#allocation5 + $0x168] sm:$0xff]
        %v548 = vld [vmem:[#allocation5 + $0x170] sm:$0xff]
        %v549 = vld [vmem:[#allocation5 + $0x178] sm:$0xff]
        %v550 = vld [vmem:[#allocation5 + $0x180] sm:$0xff]
        %v551 = vld [vmem:[#allocation5 + $0x188] sm:$0xff]
        %v552 = vld [vmem:[#allocation5 + $0x190] sm:$0xff]
        %v553 = vld [vmem:[#allocation5 + $0x198] sm:$0xff]
        %v554 = vld [vmem:[#allocation5 + $0x1a0] sm:$0xff]
        %v555 = vld [vmem:[#allocation5 + $0x1a8] sm:$0xff]
        %v556 = vld [vmem:[#allocation5 + $0x1b0] sm:$0xff]
        %v557 = vld [vmem:[#allocation5 + $0x1b8] sm:$0xff]
        %v558 = vld [vmem:[#allocation5 + $0x1c0] sm:$0xff]
        %v559 = vld [vmem:[#allocation5 + $0x1c8] sm:$0xff]
        %v560 = vld [vmem:[#allocation5 + $0x1d0] sm:$0xff]
        %v561 = vld [vmem:[#allocation5 + $0x1d8] sm:$0xff]
        %v562 = vld [vmem:[#allocation5 + $0x1e0] sm:$0xff]
        %v563 = vld [vmem:[#allocation5 + $0x1e8] sm:$0xff]
        %v564 = vld [vmem:[#allocation5 + $0x1f0] sm:$0xff]
        %v565 = vld [vmem:[#allocation5 + $0x1f8] sm:$0xff]
        %566 = vmatprep.subr.mxu0 %v503
        %567 = vmatpush1.msra.mxu0 %v502
        %568 = vmatprep.subr.mxu0 %v507
        %569 = vmatpush1.msra.mxu0 %v506
        %570 = vmatprep.subr.mxu0 %v511
        %571 = vmatpush1.msra.mxu0 %v510
        %572 = vmatprep.subr.mxu0 %v515
        %573 = vmatpush1.msra.mxu0 %v514
        %574 = vmatprep.subr.mxu0 %v519
        %575 = vmatpush1.msra.mxu0 %v518
        %576 = vmatprep.subr.mxu0 %v523
        %577 = vmatpush1.msra.mxu0 %v522
        %578 = vmatprep.subr.mxu0 %v527
        %579 = vmatpush1.msra.mxu0 %v526
        %580 = vmatprep.subr.mxu0 %v531
        %581 = vmatpush1.msra.mxu0 %v530
        %582 = vmatprep.subr.mxu0 %v535
        %583 = vmatpush1.msra.mxu0 %v534
        %584 = vmatprep.subr.mxu0 %v539
        %585 = vmatpush1.msra.mxu0 %v538
        %586 = vmatprep.subr.mxu0 %v543
        %587 = vmatpush1.msra.mxu0 %v542
        %588 = vmatprep.subr.mxu0 %v547
        %589 = vmatpush1.msra.mxu0 %v546
        %590 = vmatprep.subr.mxu0 %v551
        %591 = vmatpush1.msra.mxu0 %v550
        %592 = vmatprep.subr.mxu0 %v555
        %593 = vmatpush1.msra.mxu0 %v554
        %594 = vmatprep.subr.mxu0 %v559
        %595 = vmatpush1.msra.mxu0 %v558
        %596 = vmatprep.subr.mxu0 %v563
        %597 = vmatpush1.msra.mxu0 %v562
        %598 = vmatprep.subr.mxu0 0.0
        %599 = vmatpush1.msra.mxu0 0.0
        %600 = vmatprep.subr.mxu0 0.0
        %601 = vmatpush1.msra.mxu0 0.0
        %602 = vmatprep.subr.mxu0 0.0
        %603 = vmatpush1.msra.mxu0 0.0
        %604 = vmatprep.subr.mxu0 0.0
        %605 = vmatpush1.msra.mxu0 0.0
        %606 = vmatprep.subr.mxu0 0.0
        %607 = vmatpush1.msra.mxu0 0.0
        %608 = vmatprep.subr.mxu0 0.0
        %609 = vmatpush1.msra.mxu0 0.0
        %610 = vmatprep.subr.mxu0 0.0
        %611 = vmatpush1.msra.mxu0 0.0
        %612 = vmatprep.subr.mxu0 0.0
        %613 = vmatpush1.msra.mxu0 0.0
        %614 = vmatprep.subr.mxu0 0.0
        %615 = vmatpush1.msra.mxu0 0.0
        %616 = vmatprep.subr.mxu0 0.0
        %617 = vmatpush1.msra.mxu0 0.0
        %618 = vmatprep.subr.mxu0 0.0
        %619 = vmatpush1.msra.mxu0 0.0
        %620 = vmatprep.subr.mxu0 0.0
        %621 = vmatpush1.msra.mxu0 0.0
        %622 = vmatprep.subr.mxu0 0.0
        %623 = vmatpush1.msra.mxu0 0.0
        %624 = vmatprep.subr.mxu0 0.0
        %625 = vmatpush1.msra.mxu0 0.0
        %626 = vmatprep.subr.mxu0 0.0
        %627 = vmatpush1.msra.mxu0 0.0
        %628 = vmatprep.subr.mxu0 0.0
        %629 = vmatpush1.msra.mxu0 0.0
        %630 = vmatprep.mubr.f32.mxu0 0.0
        %631 = vmatmul.mubr.f32.gmra.mrb[0].mxu0 %v486
        %v632 = vpop.f32.mrb[0].mxu0
        %v633 = vadd.f32 0.0, %v632
        %v634 = vpop.f32.mrb[0].mxu0
        %v635 = vadd.f32 0.0, %v634
        %636 = vmatprep.mubr.f32.mxu0 0.0
        %637 = vmatmul.mubr.f32.gmra.mrb[0].mxu0 %v487
        %v638 = vpop.f32.mrb[0].mxu0
        %v639 = vadd.f32 0.0, %v638
        %v640 = vpop.f32.mrb[0].mxu0
        %v641 = vadd.f32 0.0, %v640
        %642 = vmatprep.mubr.f32.mxu0 0.0
        %643 = vmatmul.mubr.f32.gmra.mrb[0].mxu0 %v488
        %v644 = vpop.f32.mrb[0].mxu0
        %v645 = vadd.f32 0.0, %v644
        %v646 = vpop.f32.mrb[0].mxu0
        %v647 = vadd.f32 0.0, %v646
        %648 = vmatprep.mubr.f32.mxu0 0.0
        %649 = vmatmul.mubr.f32.gmra.mrb[0].mxu0 %v489
        %v650 = vpop.f32.mrb[0].mxu0
        %v651 = vadd.f32 0.0, %v650
        %v652 = vpop.f32.mrb[0].mxu0
        %v653 = vadd.f32 0.0, %v652
        %654 = vmatprep.mubr.f32.mxu0 0.0
        %655 = vmatmul.mubr.f32.gmra.mrb[0].mxu0 %v490
        %v656 = vpop.f32.mrb[0].mxu0
        %v657 = vadd.f32 0.0, %v656
        %v658 = vpop.f32.mrb[0].mxu0
        %v659 = vadd.f32 0.0, %v658
        %660 = vmatprep.mubr.f32.mxu0 0.0
        %661 = vmatmul.mubr.f32.gmra.mrb[0].mxu0 %v491
        %v662 = vpop.f32.mrb[0].mxu0
        %v663 = vadd.f32 0.0, %v662
        %v664 = vpop.f32.mrb[0].mxu0
        %v665 = vadd.f32 0.0, %v664
        %666 = vmatprep.mubr.f32.mxu0 0.0
        %667 = vmatmul.mubr.f32.gmra.mrb[0].mxu0 %v492
        %v668 = vpop.f32.mrb[0].mxu0
        %v669 = vadd.f32 0.0, %v668
        %v670 = vpop.f32.mrb[0].mxu0
        %v671 = vadd.f32 0.0, %v670
        %672 = vmatprep.mubr.f32.mxu0 0.0
        %673 = vmatmul.mubr.f32.gmra.mrb[0].mxu0 %v493
        %v674 = vpop.f32.mrb[0].mxu0
        %v675 = vadd.f32 0.0, %v674
        %v676 = vpop.f32.mrb[0].mxu0
        %v677 = vadd.f32 0.0, %v676
        %678 = vmatprep.mubr.f32.mxu0 0.0
        %679 = vmatmul.mubr.f32.gmra.mrb[0].mxu0 %v494
        %v680 = vpop.f32.mrb[0].mxu0
        %v681 = vadd.f32 0.0, %v680
        %v682 = vpop.f32.mrb[0].mxu0
        %v683 = vadd.f32 0.0, %v682
        %684 = vmatprep.mubr.f32.mxu0 0.0
        %685 = vmatmul.mubr.f32.gmra.mrb[0].mxu0 %v495
        %v686 = vpop.f32.mrb[0].mxu0
        %v687 = vadd.f32 0.0, %v686
        %v688 = vpop.f32.mrb[0].mxu0
        %v689 = vadd.f32 0.0, %v688
        %690 = vmatprep.mubr.f32.mxu0 0.0
        %691 = vmatmul.mubr.f32.gmra.mrb[0].mxu0 %v496
        %v692 = vpop.f32.mrb[0].mxu0
        %v693 = vadd.f32 0.0, %v692
        %v694 = vpop.f32.mrb[0].mxu0
        %v695 = vadd.f32 0.0, %v694
        %696 = vmatprep.mubr.f32.mxu0 0.0
        %697 = vmatmul.mubr.f32.gmra.mrb[0].mxu0 %v497
        %v698 = vpop.f32.mrb[0].mxu0
        %v699 = vadd.f32 0.0, %v698
        %v700 = vpop.f32.mrb[0].mxu0
        %v701 = vadd.f32 0.0, %v700
        %702 = vmatprep.mubr.f32.mxu0 0.0
        %703 = vmatmul.mubr.f32.gmra.mrb[0].mxu0 %v498
        %v704 = vpop.f32.mrb[0].mxu0
        %v705 = vadd.f32 0.0, %v704
        %v706 = vpop.f32.mrb[0].mxu0
        %v707 = vadd.f32 0.0, %v706
        %708 = vmatprep.mubr.f32.mxu0 0.0
        %709 = vmatmul.mubr.f32.gmra.mrb[0].mxu0 %v499
        %v710 = vpop.f32.mrb[0].mxu0
        %v711 = vadd.f32 0.0, %v710
        %v712 = vpop.f32.mrb[0].mxu0
        %v713 = vadd.f32 0.0, %v712
        %714 = vmatprep.mubr.f32.mxu0 0.0
        %715 = vmatmul.mubr.f32.gmra.mrb[0].mxu0 %v500
        %v716 = vpop.f32.mrb[0].mxu0
        %v717 = vadd.f32 0.0, %v716
        %v718 = vpop.f32.mrb[0].mxu0
        %v719 = vadd.f32 0.0, %v718
        %720 = vmatprep.mubr.f32.mxu0 0.0
        %721 = vmatmul.mubr.f32.gmra.mrb[0].mxu0 %v501
        %v722 = vpop.f32.mrb[0].mxu0
        %v723 = vadd.f32 0.0, %v722
        %v724 = vpop.f32.mrb[0].mxu0
        %v725 = vadd.f32 0.0, %v724
        %726 = vdwg.mxu0
        %727 = vmatprep.subr.mxu0 %v505
        %728 = vmatpush1.msra.mxu0 %v504
        %729 = vmatprep.subr.mxu0 %v509
        %730 = vmatpush1.msra.mxu0 %v508
        %731 = vmatprep.subr.mxu0 %v513
        %732 = vmatpush1.msra.mxu0 %v512
        %733 = vmatprep.subr.mxu0 %v517
        %734 = vmatpush1.msra.mxu0 %v516
        %735 = vmatprep.subr.mxu0 %v521
        %736 = vmatpush1.msra.mxu0 %v520
        %737 = vmatprep.subr.mxu0 %v525
        %738 = vmatpush1.msra.mxu0 %v524
        %739 = vmatprep.subr.mxu0 %v529
        %740 = vmatpush1.msra.mxu0 %v528
        %741 = vmatprep.subr.mxu0 %v533
        %742 = vmatpush1.msra.mxu0 %v532
        %743 = vmatprep.subr.mxu0 %v537
        %744 = vmatpush1.msra.mxu0 %v536
        %745 = vmatprep.subr.mxu0 %v541
        %746 = vmatpush1.msra.mxu0 %v540
        %747 = vmatprep.subr.mxu0 %v545
        %748 = vmatpush1.msra.mxu0 %v544
        %749 = vmatprep.subr.mxu0 %v549
        %750 = vmatpush1.msra.mxu0 %v548
        %751 = vmatprep.subr.mxu0 %v553
        %752 = vmatpush1.msra.mxu0 %v552
        %753 = vmatprep.subr.mxu0 %v557
        %754 = vmatpush1.msra.mxu0 %v556
        %755 = vmatprep.subr.mxu0 %v561
        %756 = vmatpush1.msra.mxu0 %v560
        %757 = vmatprep.subr.mxu0 %v565
        %758 = vmatpush1.msra.mxu0 %v564
        %759 = vmatprep.subr.mxu0 0.0
        %760 = vmatpush1.msra.mxu0 0.0
        %761 = vmatprep.subr.mxu0 0.0
        %762 = vmatpush1.msra.mxu0 0.0
        %763 = vmatprep.subr.mxu0 0.0
        %764 = vmatpush1.msra.mxu0 0.0
        %765 = vmatprep.subr.mxu0 0.0
        %766 = vmatpush1.msra.mxu0 0.0
        %767 = vmatprep.subr.mxu0 0.0
        %768 = vmatpush1.msra.mxu0 0.0
        %769 = vmatprep.subr.mxu0 0.0
        %770 = vmatpush1.msra.mxu0 0.0
        %771 = vmatprep.subr.mxu0 0.0
        %772 = vmatpush1.msra.mxu0 0.0
        %773 = vmatprep.subr.mxu0 0.0
        %774 = vmatpush1.msra.mxu0 0.0
        %775 = vmatprep.subr.mxu0 0.0
        %776 = vmatpush1.msra.mxu0 0.0
        %777 = vmatprep.subr.mxu0 0.0
        %778 = vmatpush1.msra.mxu0 0.0
        %779 = vmatprep.subr.mxu0 0.0
        %780 = vmatpush1.msra.mxu0 0.0
        %781 = vmatprep.subr.mxu0 0.0
        %782 = vmatpush1.msra.mxu0 0.0
        %783 = vmatprep.subr.mxu0 0.0
        %784 = vmatpush1.msra.mxu0 0.0
        %785 = vmatprep.subr.mxu0 0.0
        %786 = vmatpush1.msra.mxu0 0.0
        %787 = vmatprep.subr.mxu0 0.0
        %788 = vmatpush1.msra.mxu0 0.0
        %789 = vmatprep.subr.mxu0 0.0
        %790 = vmatpush1.msra.mxu0 0.0
        %791 = vmatprep.mubr.f32.mxu0 0.0
        %792 = vmatmul.mubr.f32.gmra.mrb[0].mxu0 %v486
        %v793 = vpop.f32.mrb[0].mxu0
        %v794 = vadd.f32 0.0, %v793
        %v795 = vpop.f32.mrb[0].mxu0
        %v796 = vadd.f32 0.0, %v795
        %797 = vmatprep.mubr.f32.mxu0 0.0
        %798 = vmatmul.mubr.f32.gmra.mrb[0].mxu0 %v487
        %v799 = vpop.f32.mrb[0].mxu0
        %v800 = vadd.f32 0.0, %v799
        %v801 = vpop.f32.mrb[0].mxu0
        %v802 = vadd.f32 0.0, %v801
        %803 = vmatprep.mubr.f32.mxu0 0.0
        %804 = vmatmul.mubr.f32.gmra.mrb[0].mxu0 %v488
        %v805 = vpop.f32.mrb[0].mxu0
        %v806 = vadd.f32 0.0, %v805
        %v807 = vpop.f32.mrb[0].mxu0
        %v808 = vadd.f32 0.0, %v807
        %809 = vmatprep.mubr.f32.mxu0 0.0
        %810 = vmatmul.mubr.f32.gmra.mrb[0].mxu0 %v489
        %v811 = vpop.f32.mrb[0].mxu0
        %v812 = vadd.f32 0.0, %v811
        %v813 = vpop.f32.mrb[0].mxu0
        %v814 = vadd.f32 0.0, %v813
        %815 = vmatprep.mubr.f32.mxu0 0.0
        %816 = vmatmul.mubr.f32.gmra.mrb[0].mxu0 %v490
        %v817 = vpop.f32.mrb[0].mxu0
        %v818 = vadd.f32 0.0, %v817
        %v819 = vpop.f32.mrb[0].mxu0
        %v820 = vadd.f32 0.0, %v819
        %821 = vmatprep.mubr.f32.mxu0 0.0
        %822 = vmatmul.mubr.f32.gmra.mrb[0].mxu0 %v491
        %v823 = vpop.f32.mrb[0].mxu0
        %v824 = vadd.f32 0.0, %v823
        %v825 = vpop.f32.mrb[0].mxu0
        %v826 = vadd.f32 0.0, %v825
        %827 = vmatprep.mubr.f32.mxu0 0.0
        %828 = vmatmul.mubr.f32.gmra.mrb[0].mxu0 %v492
        %v829 = vpop.f32.mrb[0].mxu0
        %v830 = vadd.f32 0.0, %v829
        %v831 = vpop.f32.mrb[0].mxu0
        %v832 = vadd.f32 0.0, %v831
        %833 = vmatprep.mubr.f32.mxu0 0.0
        %834 = vmatmul.mubr.f32.gmra.mrb[0].mxu0 %v493
        %v835 = vpop.f32.mrb[0].mxu0
        %v836 = vadd.f32 0.0, %v835
        %v837 = vpop.f32.mrb[0].mxu0
        %v838 = vadd.f32 0.0, %v837
        %839 = vmatprep.mubr.f32.mxu0 0.0
        %840 = vmatmul.mubr.f32.gmra.mrb[0].mxu0 %v494
        %v841 = vpop.f32.mrb[0].mxu0
        %v842 = vadd.f32 0.0, %v841
        %v843 = vpop.f32.mrb[0].mxu0
        %v844 = vadd.f32 0.0, %v843
        %845 = vmatprep.mubr.f32.mxu0 0.0
        %846 = vmatmul.mubr.f32.gmra.mrb[0].mxu0 %v495
        %v847 = vpop.f32.mrb[0].mxu0
        %v848 = vadd.f32 0.0, %v847
        %v849 = vpop.f32.mrb[0].mxu0
        %v850 = vadd.f32 0.0, %v849
        %851 = vmatprep.mubr.f32.mxu0 0.0
        %852 = vmatmul.mubr.f32.gmra.mrb[0].mxu0 %v496
        %v853 = vpop.f32.mrb[0].mxu0
        %v854 = vadd.f32 0.0, %v853
        %v855 = vpop.f32.mrb[0].mxu0
        %v856 = vadd.f32 0.0, %v855
        %857 = vmatprep.mubr.f32.mxu0 0.0
        %858 = vmatmul.mubr.f32.gmra.mrb[0].mxu0 %v497
        %v859 = vpop.f32.mrb[0].mxu0
        %v860 = vadd.f32 0.0, %v859
        %v861 = vpop.f32.mrb[0].mxu0
        %v862 = vadd.f32 0.0, %v861
        %863 = vmatprep.mubr.f32.mxu0 0.0
        %864 = vmatmul.mubr.f32.gmra.mrb[0].mxu0 %v498
        %v865 = vpop.f32.mrb[0].mxu0
        %v866 = vadd.f32 0.0, %v865
        %v867 = vpop.f32.mrb[0].mxu0
        %v868 = vadd.f32 0.0, %v867
        %869 = vmatprep.mubr.f32.mxu0 0.0
        %870 = vmatmul.mubr.f32.gmra.mrb[0].mxu0 %v499
        %v871 = vpop.f32.mrb[0].mxu0
        %v872 = vadd.f32 0.0, %v871
        %v873 = vpop.f32.mrb[0].mxu0
        %v874 = vadd.f32 0.0, %v873
        %875 = vmatprep.mubr.f32.mxu0 0.0
        %876 = vmatmul.mubr.f32.gmra.mrb[0].mxu0 %v500
        %v877 = vpop.f32.mrb[0].mxu0
        %v878 = vadd.f32 0.0, %v877
        %v879 = vpop.f32.mrb[0].mxu0
        %v880 = vadd.f32 0.0, %v879
        %881 = vmatprep.mubr.f32.mxu0 0.0
        %882 = vmatmul.mubr.f32.gmra.mrb[0].mxu0 %v501
        %v883 = vpop.f32.mrb[0].mxu0
        %v884 = vadd.f32 0.0, %v883
        %v885 = vpop.f32.mrb[0].mxu0
        %v886 = vadd.f32 0.0, %v885
        %887 = vdwg.mxu0
        %v888 = vadd.f32 %v422, %v633
        %v889 = vadd.f32 %v423, %v635
        %v890 = vadd.f32 %v424, %v794
        %v891 = vadd.f32 %v425, %v796
        %v892 = vadd.f32 %v426, %v639
        %v893 = vadd.f32 %v427, %v641
        %v894 = vadd.f32 %v428, %v800
        %v895 = vadd.f32 %v429, %v802
        %v896 = vadd.f32 %v430, %v645
        %v897 = vadd.f32 %v431, %v647
        %v898 = vadd.f32 %v432, %v806
        %v899 = vadd.f32 %v433, %v808
        %v900 = vadd.f32 %v434, %v651
        %v901 = vadd.f32 %v435, %v653
        %v902 = vadd.f32 %v436, %v812
        %v903 = vadd.f32 %v437, %v814
        %v904 = vadd.f32 %v438, %v657
        %v905 = vadd.f32 %v439, %v659
        %v906 = vadd.f32 %v440, %v818
        %v907 = vadd.f32 %v441, %v820
        %v908 = vadd.f32 %v442, %v663
        %v909 = vadd.f32 %v443, %v665
        %v910 = vadd.f32 %v444, %v824
        %v911 = vadd.f32 %v445, %v826
        %v912 = vadd.f32 %v446, %v669
        %v913 = vadd.f32 %v447, %v671
        %v914 = vadd.f32 %v448, %v830
        %v915 = vadd.f32 %v449, %v832
        %v916 = vadd.f32 %v450, %v675
        %v917 = vadd.f32 %v451, %v677
        %v918 = vadd.f32 %v452, %v836
        %v919 = vadd.f32 %v453, %v838
        %v920 = vadd.f32 %v454, %v681
        %v921 = vadd.f32 %v455, %v683
        %v922 = vadd.f32 %v456, %v842
        %v923 = vadd.f32 %v457, %v844
        %v924 = vadd.f32 %v458, %v687
        %v925 = vadd.f32 %v459, %v689
        %v926 = vadd.f32 %v460, %v848
        %v927 = vadd.f32 %v461, %v850
        %v928 = vadd.f32 %v462, %v693
        %v929 = vadd.f32 %v463, %v695
        %v930 = vadd.f32 %v464, %v854
        %v931 = vadd.f32 %v465, %v856
        %v932 = vadd.f32 %v466, %v699
        %v933 = vadd.f32 %v467, %v701
        %v934 = vadd.f32 %v468, %v860
        %v935 = vadd.f32 %v469, %v862
        %v936 = vadd.f32 %v470, %v705
        %v937 = vadd.f32 %v471, %v707
        %v938 = vadd.f32 %v472, %v866
        %v939 = vadd.f32 %v473, %v868
        %v940 = vadd.f32 %v474, %v711
        %v941 = vadd.f32 %v475, %v713
        %v942 = vadd.f32 %v476, %v872
        %v943 = vadd.f32 %v477, %v874
        %v944 = vadd.f32 %v478, %v717
        %v945 = vadd.f32 %v479, %v719
        %v946 = vadd.f32 %v480, %v878
        %v947 = vadd.f32 %v481, %v880
        %v948 = vadd.f32 %v482, %v723
        %v949 = vadd.f32 %v483, %v725
        %v950 = vadd.f32 %v484, %v884
        %v951 = vadd.f32 %v485, %v886
        %952 = vst [vmem:[%s282] sm:$0xff] %v888
        %953 = vst [vmem:[%s282 + $0x8] sm:$0xff] %v889
        %954 = vst [vmem:[%s282 + $0x10] sm:$0xff] %v890
        %955 = vst [vmem:[%s282 + $0x18] sm:$0xff] %v891
        %956 = vst [vmem:[%s282 + $0x20] sm:$0xff] %v892
        %957 = vst [vmem:[%s282 + $0x28] sm:$0xff] %v893
        %958 = vst [vmem:[%s282 + $0x30] sm:$0xff] %v894
        %959 = vst [vmem:[%s282 + $0x38] sm:$0xff] %v895
        %960 = vst [vmem:[%s282 + $0x40] sm:$0xff] %v896
        %961 = vst [vmem:[%s282 + $0x48] sm:$0xff] %v897
        %962 = vst [vmem:[%s282 + $0x50] sm:$0xff] %v898
        %963 = vst [vmem:[%s282 + $0x58] sm:$0xff] %v899
        %964 = vst [vmem:[%s282 + $0x60] sm:$0xff] %v900
        %965 = vst [vmem:[%s282 + $0x68] sm:$0xff] %v901
        %966 = vst [vmem:[%s282 + $0x70] sm:$0xff] %v902
        %967 = vst [vmem:[%s282 + $0x78] sm:$0xff] %v903
        %968 = vst [vmem:[%s282 + $0x80] sm:$0xff] %v904
        %969 = vst [vmem:[%s282 + $0x88] sm:$0xff] %v905
        %970 = vst [vmem:[%s282 + $0x90] sm:$0xff] %v906
        %971 = vst [vmem:[%s282 + $0x98] sm:$0xff] %v907
        %972 = vst [vmem:[%s282 + $0xa0] sm:$0xff] %v908
        %973 = vst [vmem:[%s282 + $0xa8] sm:$0xff] %v909
        %974 = vst [vmem:[%s282 + $0xb0] sm:$0xff] %v910
        %975 = vst [vmem:[%s282 + $0xb8] sm:$0xff] %v911
        %976 = vst [vmem:[%s282 + $0xc0] sm:$0xff] %v912
        %977 = vst [vmem:[%s282 + $0xc8] sm:$0xff] %v913
        %978 = vst [vmem:[%s282 + $0xd0] sm:$0xff] %v914
        %979 = vst [vmem:[%s282 + $0xd8] sm:$0xff] %v915
        %980 = vst [vmem:[%s282 + $0xe0] sm:$0xff] %v916
        %981 = vst [vmem:[%s282 + $0xe8] sm:$0xff] %v917
        %982 = vst [vmem:[%s282 + $0xf0] sm:$0xff] %v918
        %983 = vst [vmem:[%s282 + $0xf8] sm:$0xff] %v919
        %984 = vst [vmem:[%s282 + $0x100] sm:$0xff] %v920
        %985 = vst [vmem:[%s282 + $0x108] sm:$0xff] %v921
        %986 = vst [vmem:[%s282 + $0x110] sm:$0xff] %v922
        %987 = vst [vmem:[%s282 + $0x118] sm:$0xff] %v923
        %988 = vst [vmem:[%s282 + $0x120] sm:$0xff] %v924
        %989 = vst [vmem:[%s282 + $0x128] sm:$0xff] %v925
        %990 = vst [vmem:[%s282 + $0x130] sm:$0xff] %v926
        %991 = vst [vmem:[%s282 + $0x138] sm:$0xff] %v927
        %992 = vst [vmem:[%s282 + $0x140] sm:$0xff] %v928
        %993 = vst [vmem:[%s282 + $0x148] sm:$0xff] %v929
        %994 = vst [vmem:[%s282 + $0x150] sm:$0xff] %v930
        %995 = vst [vmem:[%s282 + $0x158] sm:$0xff] %v931
        %996 = vst [vmem:[%s282 + $0x160] sm:$0xff] %v932
        %997 = vst [vmem:[%s282 + $0x168] sm:$0xff] %v933
        %998 = vst [vmem:[%s282 + $0x170] sm:$0xff] %v934
        %999 = vst [vmem:[%s282 + $0x178] sm:$0xff] %v935
        %1000 = vst [vmem:[%s282 + $0x180] sm:$0xff] %v936
        %1001 = vst [vmem:[%s282 + $0x188] sm:$0xff] %v937
        %1002 = vst [vmem:[%s282 + $0x190] sm:$0xff] %v938
        %1003 = vst [vmem:[%s282 + $0x198] sm:$0xff] %v939
        %1004 = vst [vmem:[%s282 + $0x1a0] sm:$0xff] %v940
        %1005 = vst [vmem:[%s282 + $0x1a8] sm:$0xff] %v941
        %1006 = vst [vmem:[%s282 + $0x1b0] sm:$0xff] %v942
        %1007 = vst [vmem:[%s282 + $0x1b8] sm:$0xff] %v943
        %1008 = vst [vmem:[%s282 + $0x1c0] sm:$0xff] %v944
        %1009 = vst [vmem:[%s282 + $0x1c8] sm:$0xff] %v945
        %1010 = vst [vmem:[%s282 + $0x1d0] sm:$0xff] %v946
        %1011 = vst [vmem:[%s282 + $0x1d8] sm:$0xff] %v947
        %1012 = vst [vmem:[%s282 + $0x1e0] sm:$0xff] %v948
        %1013 = vst [vmem:[%s282 + $0x1e8] sm:$0xff] %v949
        %1014 = vst [vmem:[%s282 + $0x1f0] sm:$0xff] %v950
        %1015 = vst [vmem:[%s282 + $0x1f8] sm:$0xff] %v951
        %s1016 = sand.u32 %s134, 1
        %s1017 = scalar_lea.sflag [#allocation4], %s1016
        %s1018 = sand.u32 %s134, 1
        %s1019 = smul.addr %s1018, 512
        %s1020 = scalar_lea.vmem [#allocation8], %s1019
        // Predicated region
        $region49: #{tpu_custom_call.1} parent=31 // pred_check
          %p1021 = pneg %p144
        $region50: #{tpu_custom_call.1} parent=31 // pred_check_branch
          %1023 = sbr.rel (%p1021) target = $region52
        $region51: #{tpu_custom_call.1} parent=31 // pred_region
          %s1024 = smul.u32 16, %s26
          %s1025 = smul.u32 4, %s27
          %s1027 = ssub.s32 8192, 8192
          %1028 = vsyncadd %s1017, %s1027
          %s1029 = smul.addr %s1024, 4
          %s1030 = sadd.s32 %s1025, %s1029
          %s1031 = smul.addr %s1030, 128
          %s1032 = scalar_lea.hbm %s3, %s1031
          %s1033 = sshll.u32 %s1020, 4
          %s1034 = int_to_ptr.vmem [resolvable:$true] %s1033
          %1039 = dma.vmem_to_hbm [thread:$0]  %s1034, 8192, %s1032, %s1017, 512, 512, 32
        $region52: #{tpu_custom_call.1} parent=31 // pred_fallthru
          _
      $region32: #{tpu_custom_call.1} parent=5 // pred_fallthru
        _
      %p1040 = scmp.le.s32.totalorder 2, %s16
      // Predicated region
      $region53: #{tpu_custom_call.1} parent=5 // pred_check
        %p1041 = pneg %p1040
      $region54: #{tpu_custom_call.1} parent=5 // pred_check_branch
        %1043 = sbr.rel (%p1041) target = $region56
      $region55: #{tpu_custom_call.1} parent=5 // pred_region
        %s1044 = ssub.s32 %s16, 2
        // Predicated region
        $region57: #{tpu_custom_call.1} parent=55 // pred_check
          %p1045 = pneg %p150
        $region58: #{tpu_custom_call.1} parent=55 // pred_check_branch
          %1047 = sbr.rel (%p1045) target = $region60
        $region59: #{tpu_custom_call.1} parent=55 // pred_region
          %s1048 = sand.u32 %s135, 1
          %s1049 = scalar_lea.sflag [#allocation4], %s1048
          %s1050 = sand.u32 %s135, 1
          %s1051 = smul.addr %s1050, 512
          %s1052 = scalar_lea.vmem [#allocation8], %s1051
          %1053 = dma.done %s1049, 8192
        $region60: #{tpu_custom_call.1} parent=55 // pred_fallthru
          _
      $region56: #{tpu_custom_call.1} parent=5 // pred_fallthru
        _
    $region6: #{tpu_custom_call.1} parent=1 // loop_footer
      %s20 = sadd.s32 1, %s16
    $region7: #{tpu_custom_call.1} parent=1 // loop_footer_branch
      %15 = sbr.rel target = $region3
    $region8: #{tpu_custom_call.1} parent=1 // loop_exit
      _
    %1054 = vsyncpa [#allocation3], 1
    %s1055 = scalar_lea.sflag [#allocation3], 1
    %1056 = vsyncpa %s1055, 1
    %1057 = vsyncpa [#allocation6], 1
    %1058 = vsyncpa [#allocation4], 1
    %s1059 = scalar_lea.sflag [#allocation4], 1
    %1060 = vsyncpa %s1059, 1

</llo_original>
